<compile_context>
chip_gen: v7x
topology: tpu7x:2x2x1
jax: 0.10.0
libtpu: 0.0.40
codegen_flags: <defaults>
</compile_context>

<pallas_src>
import functools

import jax
import jax.numpy as jnp
from jax.experimental import pallas as pl
from jax.experimental.pallas import tpu as pltpu


_TARGET_STEPS = 8            # ~4 steps per TC on v7x, 8 on single-TC chips
_MIN_BLOCK_BYTES = 1 << 20   # >= ~1 MiB blocks keep per-step overhead negligible
_SMALL_1D_BYTES = 2 << 20    # ragged arrays below this: one full-extent block


def _round_up(a, b):
    return (a + b - 1) // b * b


def _clamp_kernel(x_ref, o_ref, *, min_val, max_val):
    # torch.clamp(torch.clamp(x, min), max) == min(max(x, min), max)
    # (matches torch semantics incl. min > max -> max, and NaN propagation).
    dt = o_ref.dtype
    lo = jnp.asarray(min_val, dtype=dt)
    hi = jnp.asarray(max_val, dtype=dt)
    o_ref[...] = jnp.minimum(jnp.maximum(x_ref[...], lo), hi)


def _pick_lanes(n):
    """Widest lane-dense last dim (multiple of 128) dividing n; 0 if ragged."""
    for lanes in (4096, 2048, 1024, 512, 256, 128):
        if n % lanes == 0:
            return lanes
    return 0


def _vmem_budget():
    try:
        vmem_cap = int(pltpu.get_tpu_info().vmem_capacity_bytes)
    except Exception:
        vmem_cap = 64 * 1024 * 1024  # conservative: v7x per-TC capacity
    # Request half of physical VMEM (64 MiB on v5e/v6e, 32 MiB on v7x).
    vmem_limit = min(vmem_cap // 2, 64 << 20)
    # Pipeline holds ~4x a block (in + out, each double-buffered) + slack.
    return vmem_limit, vmem_limit // 5


def _make_call(x, out_shape, grid, in_spec, out_spec, min_val, max_val,
               vmem_limit, n, itemsize, donate):
    kernel = functools.partial(_clamp_kernel, min_val=min_val, max_val=max_val)
    cost = pl.CostEstimate(flops=2 * n, transcendentals=0,
                           bytes_accessed=2 * n * itemsize)
    return pl.pallas_call(
        kernel,
        out_shape=out_shape,
        grid_spec=pltpu.PrefetchScalarGridSpec(
            num_scalar_prefetch=0,
            grid=grid,
            in_specs=[in_spec],
            out_specs=out_spec,
        ),
        compiler_params=pltpu.CompilerParams(
            dimension_semantics=("parallel",),
            vmem_limit_bytes=vmem_limit),
        cost_estimate=cost,
        input_output_aliases=({0: 0} if donate else {}),
    )(x)


def _clamp_2d(x2d, rows, lanes, dtype, itemsize, min_val, max_val, donate):
    vmem_limit, block_budget = _vmem_budget()
    sub = max(8, 32 // itemsize)          # dtype-dependent sublane packing
    row_bytes = lanes * itemsize

    if rows <= sub:
        block_rows = rows                 # full-extent second-minor dim: always legal
    else:
        max_block_rows = max(sub, (block_budget // row_bytes) // sub * sub)
        min_block_rows = max(sub, (_MIN_BLOCK_BYTES // row_bytes) // sub * sub)
        block_rows = max(_round_up(pl.cdiv(rows, _TARGET_STEPS), sub),
                         min_block_rows)
        block_rows = min(block_rows, max_block_rows, _round_up(rows, sub))
        steps0 = pl.cdiv(rows, block_rows)
        if steps0 > 1 and steps0 % 2 == 1:
            # v7x: even, near-even step count so both TensorCores get equal work.
            block_rows = min(max(sub, _round_up(pl.cdiv(rows, steps0 + 1), sub)),
                             max_block_rows)
    steps = pl.cdiv(rows, block_rows)

    return _make_call(
        x2d,
        jax.ShapeDtypeStruct((rows, lanes), dtype),
        (steps,),
        pl.BlockSpec((block_rows, lanes), lambda i: (i, 0)),
        pl.BlockSpec((block_rows, lanes), lambda i: (i, 0)),
        min_val, max_val, vmem_limit, rows * lanes, itemsize, donate)


def _clamp_1d(x1d, n, dtype, itemsize, min_val, max_val, donate):
    vmem_limit, block_budget = _vmem_budget()
    sub = max(8, 32 // itemsize)
    chunk = sub * 128                      # minimal aligned 1-D tile (elements)

    if n * itemsize <= _SMALL_1D_BYTES:
        block = n                          # full-extent block: legal for any n
        steps = 1
    else:
        max_block = max(chunk, (block_budget // itemsize) // chunk * chunk)
        min_block = max(chunk, (_MIN_BLOCK_BYTES // itemsize) // chunk * chunk)
        block = max(_round_up(pl.cdiv(n, _TARGET_STEPS), chunk), min_block)
        block = min(block, max_block)
        steps0 = pl.cdiv(n, block)
        if steps0 > 1 and steps0 % 2 == 1:
            block = min(max(chunk, _round_up(pl.cdiv(n, steps0 + 1), chunk)),
                        max_block)
        steps = pl.cdiv(n, block)

    return _make_call(
        x1d,
        jax.ShapeDtypeStruct((n,), dtype),
        (steps,),
        pl.BlockSpec((block,), lambda i: (i,)),
        pl.BlockSpec((block,), lambda i: (i,)),
        min_val, max_val, vmem_limit, n, itemsize, donate)


def clamp_pallas(x, min_val=0.0, max_val=1.0, *, donate_input=False):
    """Elementwise clamp via Pallas. Any shape; float (or int) dtypes."""
    orig_shape = x.shape
    dtype = x.dtype
    n = x.size
    if n == 0:
        return x  # empty input: nothing to do
    itemsize = jnp.dtype(dtype).itemsize

    lanes = _pick_lanes(n)
    if lanes:
        rows = n // lanes
        out = _clamp_2d(x.reshape(rows, lanes), rows, lanes, dtype, itemsize,
                        min_val, max_val, donate_input)
    else:
        out = _clamp_1d(x.reshape(-1), n, dtype, itemsize,
                        min_val, max_val, donate_input)
    return out.reshape(orig_shape)


class Clamp:
    """Pallas equivalent of the PyTorch Clamp module."""

    def __init__(self, min=0, max=1):
        self.min = min
        self.max = max

    def __call__(self, x):
        return clamp_pallas(x, self.min, self.max)


if __name__ == "__main__":
    key = jax.random.PRNGKey(0)
    mod = Clamp(min=0, max=1)

    # NCHW input consistent with typical conv-style usage of this wrapper.
    x = jax.random.normal(key, (2, 4, 16, 16), dtype=jnp.float32) * 2.0
    out = jax.block_until_ready(mod(x))
    ref = jnp.minimum(jnp.maximum(x, 0.0), 1.0)
    assert out.shape == x.shape and out.dtype == x.dtype
    assert jnp.allclose(out, ref), "mismatch vs reference clamp (f32)"

    # Ragged path (size not a multiple of 128) — no pad/slice extra passes.
    key2 = jax.random.PRNGKey(1)
    y = jax.random.normal(key2, (3, 5, 7, 9), dtype=jnp.float32) * 2.0
    out2 = jax.block_until_ready(mod(y))
    ref2 = jnp.minimum(jnp.maximum(y, 0.0), 1.0)
    assert out2.shape == y.shape and jnp.allclose(out2, ref2), "ragged mismatch"

    # Sub-32-bit dtype (sublane-packing path).
    z = (jax.random.normal(jax.random.PRNGKey(2), (2, 4, 16, 16),
                           dtype=jnp.float32) * 2.0).astype(jnp.bfloat16)
    out3 = jax.block_until_ready(mod(z))
    ref3 = jnp.minimum(jnp.maximum(z, jnp.bfloat16(0.0)), jnp.bfloat16(1.0))
    assert out3.dtype == jnp.bfloat16 and jnp.allclose(
        out3.astype(jnp.float32), ref3.astype(jnp.float32)), "bf16 mismatch"

    print("KERNEL_OK")
</pallas_src>

<mosaic_0001>
module attributes {stable_mosaic.version = 11 : i64} {
  func.func @_clamp_kernel(%arg0: i32, %arg1: memref<1x2048xf32, #tpu.memory_space<vmem>>, %arg2: memref<1x2048xf32, #tpu.memory_space<vmem>>) attributes {dimension_semantics = [#tpu.dimension_semantics<parallel>], iteration_bounds = array<i64: 1>, scalar_prefetch = 0 : i64, scratch_operands = 0 : i64, tpu.core_type = #tpu.core_type<tc>, window_params = [{transform_indices = @transform_0, window_bounds = array<i64: 1, 2048>}, {transform_indices = @transform_1, window_bounds = array<i64: 1, 2048>}]} {
    %c0 = arith.constant 0 : index
    %c0_0 = arith.constant 0 : index
    %0 = vector.load %arg1[%c0, %c0_0] : memref<1x2048xf32, #tpu.memory_space<vmem>>, vector<1x2048xf32>
    %cst = arith.constant 0.000000e+00 : f32
    %1 = vector.broadcast %cst : f32 to vector<1x2048xf32>
    %2 = arith.maximumf %0, %1 : vector<1x2048xf32>
    %cst_1 = arith.constant 1.000000e+00 : f32
    %3 = vector.broadcast %cst_1 : f32 to vector<1x2048xf32>
    %4 = arith.minimumf %2, %3 : vector<1x2048xf32>
    %c0_2 = arith.constant 0 : index
    %c0_3 = arith.constant 0 : index
    %5 = vector.load %arg2[%c0_2, %c0_3] : memref<1x2048xf32, #tpu.memory_space<vmem>>, vector<1x2048xf32>
    tpu.vector_store %arg2[%c0_2, %c0_3], %4 {strides = array<i32>} : memref<1x2048xf32, #tpu.memory_space<vmem>>, vector<1x2048xf32>,
    return
  }
  func.func @transform_0(%arg0: i32) -> (i32, i32) {
    %c0_i32 = arith.constant 0 : i32
    %c0_i32_0 = arith.constant 0 : i32
    return %arg0, %c0_i32 : i32, i32
  }
  func.func @transform_1(%arg0: i32) -> (i32, i32) {
    %c0_i32 = arith.constant 0 : i32
    %c0_i32_0 = arith.constant 0 : i32
    return %arg0, %c0_i32 : i32, i32
  }
}

</mosaic_0001>

<llo_original>
// kernel: tpu_custom_call.1
$region0: #{tpu_custom_call.1}
  #allocation0 [shape = 'u32[]', space=smem, size = 0x4, offset = 0x4, fixed_abs, tag = 'smem constant byte address 0x4 - core index']
  #allocation1 [shape = 'u32[144,128]{1,0:T(1,128)}', space=vmem, size = 0x12000, scoped, tag = 'internal scratch']
  %s0 = inlined_call_operand.hbm [shape: f32[1,2048], index: 0, kind: input, shape index: {}]
  %s1 = inlined_call_operand.hbm [shape: f32[1,2048], index: 1, kind: output, shape index: {}]
  %s2 = sld [smem:[#allocation0]]
  $region18: #{tpu_custom_call.1} parent=0
    _
  %s4 = ssub.s32 1, %s2
  %s5 = scalar_select 0, %s4, %s2
  $region1: #{tpu_custom_call.1} parent=0
    #allocation2 [shape = 'u8[8192]{0}', space=vmem, size = 0x2000, scoped, tag = 'input window, operand 0, single buffered']
    #allocation3 [shape = 's32[1]{0}', space=sflag, size = 0x4, scoped, tag = 'scoped memory for tpu_custom_call.1']
    #allocation4 [shape = 's32[1]{0}', space=sflag, size = 0x4, scoped, tag = 'scoped memory for tpu_custom_call.1']
    #allocation5 [shape = 'u8[8192]{0}', space=vmem, size = 0x2000, scoped, tag = 'output window, operand 0, single buffered']
    %6 = vsyncpa [#allocation3], 0
    %7 = vsyncpa [#allocation4], 0
    // Predicated region
    $region2: #{tpu_custom_call.1} parent=1 // pred_check
      _
    $region3: #{tpu_custom_call.1} parent=1 // pred_check_branch
      %9 = sbr.rel (0) target = $region5
    $region4: #{tpu_custom_call.1} parent=1 // pred_region
      %s11 = ssub.s32 256, 256
      %12 = vsyncadd [#allocation3], %s11
      %s14 = sshll.u32 [#allocation2], 4
      %s15 = int_to_ptr.vmem [resolvable:$true] %s14
      %17 = dma.hbm_to_vmem [thread:$0]  %s0, 256, %s15, [#allocation3]
    $region5: #{tpu_custom_call.1} parent=1 // pred_fallthru
      _
    // Predicated region
    $region6: #{tpu_custom_call.1} parent=1 // pred_check
      _
    $region7: #{tpu_custom_call.1} parent=1 // pred_check_branch
      %19 = sbr.rel (0) target = $region9
    $region8: #{tpu_custom_call.1} parent=1 // pred_region
      %20 = dma.done [#allocation3], 256
    $region9: #{tpu_custom_call.1} parent=1 // pred_fallthru
      _
    %v21 = vld [vmem:[#allocation2] sm:$0xff]
    %v22 = vld [vmem:[#allocation2 + $0x8] sm:$0xff]
    %v23 = vmax.f32 %v21, 0.0
    %v24 = vmax.f32 %v22, 0.0
    %v25 = vmin.f32 %v23, 1.0
    %v26 = vmin.f32 %v24, 1.0
    %27 = vst [vmem:[#allocation5] sm:$0xff] %v25
    %28 = vst [vmem:[#allocation5 + $0x8] sm:$0xff] %v26
    // Predicated region
    $region10: #{tpu_custom_call.1} parent=1 // pred_check
      _
    $region11: #{tpu_custom_call.1} parent=1 // pred_check_branch
      %30 = sbr.rel (0) target = $region13
    $region12: #{tpu_custom_call.1} parent=1 // pred_region
      %s32 = ssub.s32 256, 256
      %33 = vsyncadd [#allocation4], %s32
      %s35 = sshll.u32 [#allocation5], 4
      %s36 = int_to_ptr.vmem [resolvable:$true] %s35
      %38 = dma.vmem_to_hbm [thread:$0]  %s36, 256, %s1, [#allocation4]
    $region13: #{tpu_custom_call.1} parent=1 // pred_fallthru
      _
    // Predicated region
    $region14: #{tpu_custom_call.1} parent=1 // pred_check
      _
    $region15: #{tpu_custom_call.1} parent=1 // pred_check_branch
      %40 = sbr.rel (0) target = $region17
    $region16: #{tpu_custom_call.1} parent=1 // pred_region
      %41 = dma.done [#allocation4], 256
    $region17: #{tpu_custom_call.1} parent=1 // pred_fallthru
      _
    %42 = vsyncpa [#allocation3], 1
    %43 = vsyncpa [#allocation4], 1

</llo_original>
